<compile_context>
chip_gen: v7x
topology: tpu7x:2x2x1
jax: 0.10.0
libtpu: 0.0.40
codegen_flags: <defaults>
</compile_context>

<pallas_src>
import math

import jax
import jax.numpy as jnp
from jax.experimental import pallas as pl
from jax.experimental.pallas import tpu as pltpu

_THRESHOLD = 1.0


# -------------------- Pallas kernels: one fused Linear + LIF-fire layer --------------------
def _hidden_layer_kernel(x_ref, w_ref, b_ref, spk_ref, acc_ref):
    k = pl.program_id(1)

    @pl.when(k == 0)
    def _():
        acc_ref[...] = jnp.zeros_like(acc_ref)

    acc_ref[...] += jnp.dot(x_ref[...], w_ref[...],
                            preferred_element_type=jnp.float32)

    @pl.when(k == pl.num_programs(1) - 1)
    def _():
        h = acc_ref[...] + b_ref[...].astype(jnp.float32)
        spk_ref[...] = (h > _THRESHOLD).astype(spk_ref.dtype)


def _output_layer_kernel(x_ref, w_ref, b_ref, spk_ref, mem_ref, acc_ref):
    k = pl.program_id(1)

    @pl.when(k == 0)
    def _():
        acc_ref[...] = jnp.zeros_like(acc_ref)

    acc_ref[...] += jnp.dot(x_ref[...], w_ref[...],
                            preferred_element_type=jnp.float32)

    @pl.when(k == pl.num_programs(1) - 1)
    def _():
        h = acc_ref[...] + b_ref[...].astype(jnp.float32)
        mem_ref[...] = h                                   # mem_fc4 (pre-next-step reset)
        spk_ref[...] = (h > _THRESHOLD).astype(spk_ref.dtype)


# -------------------- tiling / wrapper --------------------
def _pick_tile(dim, target):
    """Largest tile <= target that evenly divides `dim` (prefers multiples of 128)."""
    if dim <= target:
        return dim
    t = (target // 128) * 128
    while t >= 128:
        if dim % t == 0:
            return t
        t -= 128
    t = min(target, dim)
    while t > 1:
        if dim % t == 0:
            return t
        t -= 1
    return dim


def _lif_linear_layer(x, w, b, *, last, spk_dtype, tn_target=1024, tk_target=2048):
    """Fused (x @ w + b) -> Heaviside(>1) layer.

    x: (Bp, K) activations (f32 input or bf16 spikes)
    w: (K, N)  bf16 weights, stored transposed as (in, out)
    b: (1, N)  f32 bias
    Returns (spk,) for hidden layers or (spk, mem) for the output layer.
    """
    Bp, K = x.shape
    Kw, N = w.shape
    assert K == Kw and b.shape == (1, N)

    tk = _pick_tile(K, tk_target)
    tn = _pick_tile(N, tn_target)
    grid = (N // tn, K // tk)

    in_specs = [
        pl.BlockSpec((Bp, tk), lambda n, k: (0, k)),   # activation stripe (re-read per n; tiny)
        pl.BlockSpec((tk, tn), lambda n, k: (k, n)),   # streamed weight tile
        pl.BlockSpec((1, tn), lambda n, k: (0, n)),    # bias tile
    ]
    out_spec = pl.BlockSpec((Bp, tn), lambda n, k: (0, n))

    if last:
        kernel = _output_layer_kernel
        out_shape = (jax.ShapeDtypeStruct((Bp, N), spk_dtype),
                     jax.ShapeDtypeStruct((Bp, N), jnp.float32))
        out_specs = (out_spec, out_spec)
        n_out = 2
    else:
        kernel = _hidden_layer_kernel
        out_shape = (jax.ShapeDtypeStruct((Bp, N), spk_dtype),)
        out_specs = (out_spec,)
        n_out = 1

    # VMEM budget: double-buffered in/out tiles + f32 accumulator, with ~2x headroom,
    # capped well below v7x's 64 MiB physical VMEM per TensorCore.
    tile_bytes = (Bp * tk * x.dtype.itemsize
                  + tk * tn * w.dtype.itemsize
                  + tn * 4
                  + n_out * Bp * tn * 4
                  + Bp * tn * 4)
    vmem_limit = int(min(48 << 20, max(8 << 20, 4 * tile_bytes)))

    return pl.pallas_call(
        kernel,
        out_shape=out_shape,
        grid_spec=pltpu.PrefetchScalarGridSpec(
            num_scalar_prefetch=0,
            grid=grid,
            in_specs=in_specs,
            out_specs=out_specs,
            scratch_shapes=[pltpu.VMEM((Bp, tn), jnp.float32)],
        ),
        compiler_params=pltpu.CompilerParams(
            dimension_semantics=("parallel", "arbitrary"),   # N parallel, K reduction
            vmem_limit_bytes=vmem_limit,
        ),
    )(x, w, b)


@jax.jit
def topology_net_forward(x_nchw, params):
    """x_nchw: (B, C, H, W) float32; params: dict of bf16 transposed weights + f32 biases."""
    B = x_nchw.shape[0]
    x_flat = x_nchw.reshape(B, -1).astype(jnp.float32)     # nn.Flatten equivalent

    d_in = params["w1"].shape[0]
    assert x_flat.shape[1] == d_in

    # Pad batch to a multiple of 8 sublanes (padded rows are sliced off at the end;
    # they only feed other padded rows, so real outputs are unaffected).
    Bp = max(8, ((B + 7) // 8) * 8)
    if Bp != B:
        x_flat = jnp.pad(x_flat, ((0, Bp - B), (0, 0)))

    (s1,) = _lif_linear_layer(x_flat, params["w1"], params["b1"],
                              last=False, spk_dtype=jnp.bfloat16)
    (s2,) = _lif_linear_layer(s1, params["w2"], params["b2"],
                              last=False, spk_dtype=jnp.bfloat16)
    (s3,) = _lif_linear_layer(s2, params["w3"], params["b3"],
                              last=False, spk_dtype=jnp.bfloat16)
    spk4, mem4 = _lif_linear_layer(s3, params["w4"], params["b4"],
                                   last=True, spk_dtype=jnp.float32)
    return spk4[:B], mem4[:B]


# -------------------- deterministic parameter init (PyTorch Linear style) --------------------
def init_linear(key, fan_in, fan_out):
    """Returns (W_T of shape (fan_in, fan_out) in bf16, b of shape (1, fan_out) in f32)."""
    k_w, k_b = jax.random.split(key)
    bound = 1.0 / math.sqrt(fan_in)
    w = jax.random.uniform(k_w, (fan_in, fan_out), jnp.float32, -bound, bound)
    b = jax.random.uniform(k_b, (1, fan_out), jnp.float32, -bound, bound)
    return w.astype(jnp.bfloat16), b


def make_params(key, d_in, d_hid, d_out):
    keys = jax.random.split(key, 4)
    w1, b1 = init_linear(keys[0], d_in, d_hid)
    w2, b2 = init_linear(keys[1], d_hid, d_hid)
    w3, b3 = init_linear(keys[2], d_hid, d_hid)
    w4, b4 = init_linear(keys[3], d_hid, d_out)
    return dict(w1=w1, b1=b1, w2=w2, b2=b2, w3=w3, b3=b3, w4=w4, b4=b4)


# -------------------- pure-JAX reference (same bf16 weight values, f32 math) --------------------
def reference_forward(x_nchw, p, threshold=_THRESHOLD):
    x = x_nchw.reshape(x_nchw.shape[0], -1).astype(jnp.float32)
    f32 = lambda a: a.astype(jnp.float32)
    h1 = x @ f32(p["w1"]) + p["b1"]; s1 = (h1 > threshold).astype(jnp.float32)
    h2 = s1 @ f32(p["w2"]) + p["b2"]; s2 = (h2 > threshold).astype(jnp.float32)
    h3 = s2 @ f32(p["w3"]) + p["b3"]; s3 = (h3 > threshold).astype(jnp.float32)
    h4 = s3 @ f32(p["w4"]) + p["b4"]; s4 = (h4 > threshold).astype(jnp.float32)
    return s4, h4


if __name__ == "__main__":
    # Small-shape stand-in for the real cfg:
    #   real: num_inps = 80*128 = 10240, hidden = num_inps*hidden_scale, outputs from cfg
    #   here: x = (B=2, C=1, H=8, W=16) -> D_in=128, hidden_scale=2 -> D_hid=256,
    #         num_outputs = pos_xz(3)*pop_code(8) + orientation(4) + pos_y(4) = 32
    B, C, H, W = 2, 1, 8, 16
    D_IN = C * H * W
    D_HID = 2 * D_IN
    D_OUT = 3 * 8 + 4 + 4

    key = jax.random.PRNGKey(0)
    k_x, k_p = jax.random.split(key)
    # Scale inputs up a bit so some neurons actually cross the threshold.
    x = 4.0 * jax.random.normal(k_x, (B, C, H, W), jnp.float32)
    params = make_params(k_p, D_IN, D_HID, D_OUT)

    spk, mem = jax.block_until_ready(topology_net_forward(x, params))

    spk_ref, mem_ref = reference_forward(x, params)
    assert spk.shape == (B, D_OUT) and mem.shape == (B, D_OUT)
    assert jnp.array_equal(spk, spk_ref), "spike mismatch vs reference"
    assert jnp.allclose(mem, mem_ref, atol=1e-4, rtol=1e-4), "membrane mismatch vs reference"

    print("KERNEL_OK")
</pallas_src>

<mosaic_0001>
module attributes {stable_mosaic.version = 11 : i64} {
  func.func @_hidden_layer_kernel(%arg0: i32, %arg1: i32, %arg2: memref<8x256xbf16, #tpu.memory_space<vmem>>, %arg3: memref<256x256xbf16, #tpu.memory_space<vmem>>, %arg4: memref<1x256xf32, #tpu.memory_space<vmem>>, %arg5: memref<8x256xbf16, #tpu.memory_space<vmem>>, %arg6: memref<8x256xf32, #tpu.memory_space<vmem>>) attributes {dimension_semantics = [#tpu.dimension_semantics<parallel>, #tpu.dimension_semantics<arbitrary>], iteration_bounds = array<i64: 1, 1>, scalar_prefetch = 0 : i64, scratch_operands = 1 : i64, tpu.core_type = #tpu.core_type<tc>, window_params = [{transform_indices = @transform_0, window_bounds = array<i64: 8, 256>}, {transform_indices = @transform_1, window_bounds = array<i64: 256, 256>}, {transform_indices = @transform_2, window_bounds = array<i64: 1, 256>}, {transform_indices = @transform_3, window_bounds = array<i64: 8, 256>}]} {
    %c0_i32 = arith.constant 0 : i32
    %0 = arith.cmpi eq, %arg1, %c0_i32 : i32
    %1 = arith.extui %0 : i1 to i32
    %c0_i32_0 = arith.constant 0 : i32
    %2 = arith.cmpi ne, %1, %c0_i32_0 : i32
    scf.if %2 {
      %cst_10 = arith.constant 0.000000e+00 : f32
      %12 = vector.broadcast %cst_10 : f32 to vector<8x256xf32>
      %c0_11 = arith.constant 0 : index
      %c0_12 = arith.constant 0 : index
      %13 = vector.load %arg6[%c0_11, %c0_12] : memref<8x256xf32, #tpu.memory_space<vmem>>, vector<8x256xf32>
      tpu.vector_store %arg6[%c0_11, %c0_12], %12 {strides = array<i32>} : memref<8x256xf32, #tpu.memory_space<vmem>>, vector<8x256xf32>,
    } else {
    }
    %c0 = arith.constant 0 : index
    %c0_1 = arith.constant 0 : index
    %3 = vector.load %arg6[%c0, %c0_1] : memref<8x256xf32, #tpu.memory_space<vmem>>, vector<8x256xf32>
    %c0_2 = arith.constant 0 : index
    %c0_3 = arith.constant 0 : index
    %4 = vector.load %arg2[%c0_2, %c0_3] : memref<8x256xbf16, #tpu.memory_space<vmem>>, vector<8x256xbf16>
    %c0_4 = arith.constant 0 : index
    %c0_5 = arith.constant 0 : index
    %5 = vector.load %arg3[%c0_4, %c0_5] : memref<256x256xbf16, #tpu.memory_space<vmem>>, vector<256x256xbf16>
    %cst = arith.constant dense<0.000000e+00> : vector<8x256xf32>
    %6 = tpu.matmul %4, %5, %cst {dimension_numbers = #tpu.dot_dimension_numbers<[1], [0], [0], [1], [0, 0, 1, 1], [], []>} : vector<8x256xbf16>, vector<256x256xbf16>, vector<8x256xf32> -> vector<8x256xf32>
    %7 = arith.addf %3, %6 : vector<8x256xf32>
    %c0_6 = arith.constant 0 : index
    %c0_7 = arith.constant 0 : index
    %8 = vector.load %arg6[%c0_6, %c0_7] : memref<8x256xf32, #tpu.memory_space<vmem>>, vector<8x256xf32>
    tpu.vector_store %arg6[%c0_6, %c0_7], %7 {strides = array<i32>} : memref<8x256xf32, #tpu.memory_space<vmem>>, vector<8x256xf32>,
    %c0_i32_8 = arith.constant 0 : i32
    %9 = arith.cmpi eq, %arg1, %c0_i32_8 : i32
    %10 = arith.extui %9 : i1 to i32
    %c0_i32_9 = arith.constant 0 : i32
    %11 = arith.cmpi ne, %10, %c0_i32_9 : i32
    scf.if %11 {
      %c0_10 = arith.constant 0 : index
      %c0_11 = arith.constant 0 : index
      %12 = vector.load %arg6[%c0_10, %c0_11] : memref<8x256xf32, #tpu.memory_space<vmem>>, vector<8x256xf32>
      %c0_12 = arith.constant 0 : index
      %c0_13 = arith.constant 0 : index
      %13 = vector.load %arg4[%c0_12, %c0_13] : memref<1x256xf32, #tpu.memory_space<vmem>>, vector<1x256xf32>
      %14 = vector.broadcast %13 : vector<1x256xf32> to vector<8x256xf32>
      %15 = arith.addf %12, %14 : vector<8x256xf32>
      %cst_14 = arith.constant 1.000000e+00 : f32
      %16 = vector.broadcast %cst_14 : f32 to vector<8x256xf32>
      %17 = arith.cmpf ogt, %15, %16 : vector<8x256xf32>
      %18 = arith.extui %17 : vector<8x256xi1> to vector<8x256xi32>
      %19 = arith.sitofp %18 : vector<8x256xi32> to vector<8x256xf32>
      %20 = arith.truncf %19 : vector<8x256xf32> to vector<8x256xbf16>
      %c0_15 = arith.constant 0 : index
      %c0_16 = arith.constant 0 : index
      %21 = vector.load %arg5[%c0_15, %c0_16] : memref<8x256xbf16, #tpu.memory_space<vmem>>, vector<8x256xbf16>
      tpu.vector_store %arg5[%c0_15, %c0_16], %20 {strides = array<i32>} : memref<8x256xbf16, #tpu.memory_space<vmem>>, vector<8x256xbf16>,
    } else {
    }
    return
  }
  func.func @transform_0(%arg0: i32, %arg1: i32) -> (i32, i32) {
    %c0_i32 = arith.constant 0 : i32
    %c0_i32_0 = arith.constant 0 : i32
    return %c0_i32, %arg1 : i32, i32
  }
  func.func @transform_1(%arg0: i32, %arg1: i32) -> (i32, i32) {
    %c0_i32 = arith.constant 0 : i32
    return %arg1, %arg0 : i32, i32
  }
  func.func @transform_2(%arg0: i32, %arg1: i32) -> (i32, i32) {
    %c0_i32 = arith.constant 0 : i32
    %c0_i32_0 = arith.constant 0 : i32
    return %c0_i32, %arg0 : i32, i32
  }
  func.func @transform_3(%arg0: i32, %arg1: i32) -> (i32, i32) {
    %c0_i32 = arith.constant 0 : i32
    %c0_i32_0 = arith.constant 0 : i32
    return %c0_i32, %arg0 : i32, i32
  }
}

module attributes {stable_mosaic.version = 11 : i64} {
  func.func @_hidden_layer_kernel(%arg0: i32, %arg1: i32, %arg2: memref<8x128xf32, #tpu.memory_space<vmem>>, %arg3: memref<128x256xbf16, #tpu.memory_space<vmem>>, %arg4: memref<1x256xf32, #tpu.memory_space<vmem>>, %arg5: memref<8x256xbf16, #tpu.memory_space<vmem>>, %arg6: memref<8x256xf32, #tpu.memory_space<vmem>>) attributes {dimension_semantics = [#tpu.dimension_semantics<parallel>, #tpu.dimension_semantics<arbitrary>], iteration_bounds = array<i64: 1, 1>, scalar_prefetch = 0 : i64, scratch_operands = 1 : i64, tpu.core_type = #tpu.core_type<tc>, window_params = [{transform_indices = @transform_0, window_bounds = array<i64: 8, 128>}, {transform_indices = @transform_1, window_bounds = array<i64: 128, 256>}, {transform_indices = @transform_2, window_bounds = array<i64: 1, 256>}, {transform_indices = @transform_3, window_bounds = array<i64: 8, 256>}]} {
    %c0_i32 = arith.constant 0 : i32
    %0 = arith.cmpi eq, %arg1, %c0_i32 : i32
    %1 = arith.extui %0 : i1 to i32
    %c0_i32_0 = arith.constant 0 : i32
    %2 = arith.cmpi ne, %1, %c0_i32_0 : i32
    scf.if %2 {
      %cst_10 = arith.constant 0.000000e+00 : f32
      %12 = vector.broadcast %cst_10 : f32 to vector<8x256xf32>
      %c0_11 = arith.constant 0 : index
      %c0_12 = arith.constant 0 : index
      %13 = vector.load %arg6[%c0_11, %c0_12] : memref<8x256xf32, #tpu.memory_space<vmem>>, vector<8x256xf32>
      tpu.vector_store %arg6[%c0_11, %c0_12], %12 {strides = array<i32>} : memref<8x256xf32, #tpu.memory_space<vmem>>, vector<8x256xf32>,
    } else {
    }
    %c0 = arith.constant 0 : index
    %c0_1 = arith.constant 0 : index
    %3 = vector.load %arg6[%c0, %c0_1] : memref<8x256xf32, #tpu.memory_space<vmem>>, vector<8x256xf32>
    %c0_2 = arith.constant 0 : index
    %c0_3 = arith.constant 0 : index
    %4 = vector.load %arg2[%c0_2, %c0_3] : memref<8x128xf32, #tpu.memory_space<vmem>>, vector<8x128xf32>
    %c0_4 = arith.constant 0 : index
    %c0_5 = arith.constant 0 : index
    %5 = vector.load %arg3[%c0_4, %c0_5] : memref<128x256xbf16, #tpu.memory_space<vmem>>, vector<128x256xbf16>
    %cst = arith.constant dense<0.000000e+00> : vector<8x256xf32>
    %6 = tpu.matmul %4, %5, %cst {dimension_numbers = #tpu.dot_dimension_numbers<[1], [0], [0], [1], [0, 0, 1, 1], [], []>} : vector<8x128xf32>, vector<128x256xbf16>, vector<8x256xf32> -> vector<8x256xf32>
    %7 = arith.addf %3, %6 : vector<8x256xf32>
    %c0_6 = arith.constant 0 : index
    %c0_7 = arith.constant 0 : index
    %8 = vector.load %arg6[%c0_6, %c0_7] : memref<8x256xf32, #tpu.memory_space<vmem>>, vector<8x256xf32>
    tpu.vector_store %arg6[%c0_6, %c0_7], %7 {strides = array<i32>} : memref<8x256xf32, #tpu.memory_space<vmem>>, vector<8x256xf32>,
    %c0_i32_8 = arith.constant 0 : i32
    %9 = arith.cmpi eq, %arg1, %c0_i32_8 : i32
    %10 = arith.extui %9 : i1 to i32
    %c0_i32_9 = arith.constant 0 : i32
    %11 = arith.cmpi ne, %10, %c0_i32_9 : i32
    scf.if %11 {
      %c0_10 = arith.constant 0 : index
      %c0_11 = arith.constant 0 : index
      %12 = vector.load %arg6[%c0_10, %c0_11] : memref<8x256xf32, #tpu.memory_space<vmem>>, vector<8x256xf32>
      %c0_12 = arith.constant 0 : index
      %c0_13 = arith.constant 0 : index
      %13 = vector.load %arg4[%c0_12, %c0_13] : memref<1x256xf32, #tpu.memory_space<vmem>>, vector<1x256xf32>
      %14 = vector.broadcast %13 : vector<1x256xf32> to vector<8x256xf32>
      %15 = arith.addf %12, %14 : vector<8x256xf32>
      %cst_14 = arith.constant 1.000000e+00 : f32
      %16 = vector.broadcast %cst_14 : f32 to vector<8x256xf32>
      %17 = arith.cmpf ogt, %15, %16 : vector<8x256xf32>
      %18 = arith.extui %17 : vector<8x256xi1> to vector<8x256xi32>
      %19 = arith.sitofp %18 : vector<8x256xi32> to vector<8x256xf32>
      %20 = arith.truncf %19 : vector<8x256xf32> to vector<8x256xbf16>
      %c0_15 = arith.constant 0 : index
      %c0_16 = arith.constant 0 : index
      %21 = vector.load %arg5[%c0_15, %c0_16] : memref<8x256xbf16, #tpu.memory_space<vmem>>, vector<8x256xbf16>
      tpu.vector_store %arg5[%c0_15, %c0_16], %20 {strides = array<i32>} : memref<8x256xbf16, #tpu.memory_space<vmem>>, vector<8x256xbf16>,
    } else {
    }
    return
  }
  func.func @transform_0(%arg0: i32, %arg1: i32) -> (i32, i32) {
    %c0_i32 = arith.constant 0 : i32
    %c0_i32_0 = arith.constant 0 : i32
    return %c0_i32, %arg1 : i32, i32
  }
  func.func @transform_1(%arg0: i32, %arg1: i32) -> (i32, i32) {
    %c0_i32 = arith.constant 0 : i32
    return %arg1, %arg0 : i32, i32
  }
  func.func @transform_2(%arg0: i32, %arg1: i32) -> (i32, i32) {
    %c0_i32 = arith.constant 0 : i32
    %c0_i32_0 = arith.constant 0 : i32
    return %c0_i32, %arg0 : i32, i32
  }
  func.func @transform_3(%arg0: i32, %arg1: i32) -> (i32, i32) {
    %c0_i32 = arith.constant 0 : i32
    %c0_i32_0 = arith.constant 0 : i32
    return %c0_i32, %arg0 : i32, i32
  }
}

module attributes {stable_mosaic.version = 11 : i64} {
  func.func @_hidden_layer_kernel(%arg0: i32, %arg1: i32, %arg2: memref<8x256xbf16, #tpu.memory_space<vmem>>, %arg3: memref<256x256xbf16, #tpu.memory_space<vmem>>, %arg4: memref<1x256xf32, #tpu.memory_space<vmem>>, %arg5: memref<8x256xbf16, #tpu.memory_space<vmem>>, %arg6: memref<8x256xf32, #tpu.memory_space<vmem>>) attributes {dimension_semantics = [#tpu.dimension_semantics<parallel>, #tpu.dimension_semantics<arbitrary>], iteration_bounds = array<i64: 1, 1>, scalar_prefetch = 0 : i64, scratch_operands = 1 : i64, tpu.core_type = #tpu.core_type<tc>, window_params = [{transform_indices = @transform_0, window_bounds = array<i64: 8, 256>}, {transform_indices = @transform_1, window_bounds = array<i64: 256, 256>}, {transform_indices = @transform_2, window_bounds = array<i64: 1, 256>}, {transform_indices = @transform_3, window_bounds = array<i64: 8, 256>}]} {
    %c0_i32 = arith.constant 0 : i32
    %0 = arith.cmpi eq, %arg1, %c0_i32 : i32
    %1 = arith.extui %0 : i1 to i32
    %c0_i32_0 = arith.constant 0 : i32
    %2 = arith.cmpi ne, %1, %c0_i32_0 : i32
    scf.if %2 {
      %cst_10 = arith.constant 0.000000e+00 : f32
      %12 = vector.broadcast %cst_10 : f32 to vector<8x256xf32>
      %c0_11 = arith.constant 0 : index
      %c0_12 = arith.constant 0 : index
      %13 = vector.load %arg6[%c0_11, %c0_12] : memref<8x256xf32, #tpu.memory_space<vmem>>, vector<8x256xf32>
      tpu.vector_store %arg6[%c0_11, %c0_12], %12 {strides = array<i32>} : memref<8x256xf32, #tpu.memory_space<vmem>>, vector<8x256xf32>,
    } else {
    }
    %c0 = arith.constant 0 : index
    %c0_1 = arith.constant 0 : index
    %3 = vector.load %arg6[%c0, %c0_1] : memref<8x256xf32, #tpu.memory_space<vmem>>, vector<8x256xf32>
    %c0_2 = arith.constant 0 : index
    %c0_3 = arith.constant 0 : index
    %4 = vector.load %arg2[%c0_2, %c0_3] : memref<8x256xbf16, #tpu.memory_space<vmem>>, vector<8x256xbf16>
    %c0_4 = arith.constant 0 : index
    %c0_5 = arith.constant 0 : index
    %5 = vector.load %arg3[%c0_4, %c0_5] : memref<256x256xbf16, #tpu.memory_space<vmem>>, vector<256x256xbf16>
    %cst = arith.constant dense<0.000000e+00> : vector<8x256xf32>
    %6 = tpu.matmul %4, %5, %cst {dimension_numbers = #tpu.dot_dimension_numbers<[1], [0], [0], [1], [0, 0, 1, 1], [], []>} : vector<8x256xbf16>, vector<256x256xbf16>, vector<8x256xf32> -> vector<8x256xf32>
    %7 = arith.addf %3, %6 : vector<8x256xf32>
    %c0_6 = arith.constant 0 : index
    %c0_7 = arith.constant 0 : index
    %8 = vector.load %arg6[%c0_6, %c0_7] : memref<8x256xf32, #tpu.memory_space<vmem>>, vector<8x256xf32>
    tpu.vector_store %arg6[%c0_6, %c0_7], %7 {strides = array<i32>} : memref<8x256xf32, #tpu.memory_space<vmem>>, vector<8x256xf32>,
    %c0_i32_8 = arith.constant 0 : i32
    %9 = arith.cmpi eq, %arg1, %c0_i32_8 : i32
    %10 = arith.extui %9 : i1 to i32
    %c0_i32_9 = arith.constant 0 : i32
    %11 = arith.cmpi ne, %10, %c0_i32_9 : i32
    scf.if %11 {
      %c0_10 = arith.constant 0 : index
      %c0_11 = arith.constant 0 : index
      %12 = vector.load %arg6[%c0_10, %c0_11] : memref<8x256xf32, #tpu.memory_space<vmem>>, vector<8x256xf32>
      %c0_12 = arith.constant 0 : index
      %c0_13 = arith.constant 0 : index
      %13 = vector.load %arg4[%c0_12, %c0_13] : memref<1x256xf32, #tpu.memory_space<vmem>>, vector<1x256xf32>
      %14 = vector.broadcast %13 : vector<1x256xf32> to vector<8x256xf32>
      %15 = arith.addf %12, %14 : vector<8x256xf32>
      %cst_14 = arith.constant 1.000000e+00 : f32
      %16 = vector.broadcast %cst_14 : f32 to vector<8x256xf32>
      %17 = arith.cmpf ogt, %15, %16 : vector<8x256xf32>
      %18 = arith.extui %17 : vector<8x256xi1> to vector<8x256xi32>
      %19 = arith.sitofp %18 : vector<8x256xi32> to vector<8x256xf32>
      %20 = arith.truncf %19 : vector<8x256xf32> to vector<8x256xbf16>
      %c0_15 = arith.constant 0 : index
      %c0_16 = arith.constant 0 : index
      %21 = vector.load %arg5[%c0_15, %c0_16] : memref<8x256xbf16, #tpu.memory_space<vmem>>, vector<8x256xbf16>
      tpu.vector_store %arg5[%c0_15, %c0_16], %20 {strides = array<i32>} : memref<8x256xbf16, #tpu.memory_space<vmem>>, vector<8x256xbf16>,
    } else {
    }
    return
  }
  func.func @transform_0(%arg0: i32, %arg1: i32) -> (i32, i32) {
    %c0_i32 = arith.constant 0 : i32
    %c0_i32_0 = arith.constant 0 : i32
    return %c0_i32, %arg1 : i32, i32
  }
  func.func @transform_1(%arg0: i32, %arg1: i32) -> (i32, i32) {
    %c0_i32 = arith.constant 0 : i32
    return %arg1, %arg0 : i32, i32
  }
  func.func @transform_2(%arg0: i32, %arg1: i32) -> (i32, i32) {
    %c0_i32 = arith.constant 0 : i32
    %c0_i32_0 = arith.constant 0 : i32
    return %c0_i32, %arg0 : i32, i32
  }
  func.func @transform_3(%arg0: i32, %arg1: i32) -> (i32, i32) {
    %c0_i32 = arith.constant 0 : i32
    %c0_i32_0 = arith.constant 0 : i32
    return %c0_i32, %arg0 : i32, i32
  }
}

module attributes {stable_mosaic.version = 11 : i64} {
  func.func @_output_layer_kernel(%arg0: i32, %arg1: i32, %arg2: memref<8x256xbf16, #tpu.memory_space<vmem>>, %arg3: memref<256x32xbf16, #tpu.memory_space<vmem>>, %arg4: memref<1x32xf32, #tpu.memory_space<vmem>>, %arg5: memref<8x32xf32, #tpu.memory_space<vmem>>, %arg6: memref<8x32xf32, #tpu.memory_space<vmem>>, %arg7: memref<8x32xf32, #tpu.memory_space<vmem>>) attributes {dimension_semantics = [#tpu.dimension_semantics<parallel>, #tpu.dimension_semantics<arbitrary>], iteration_bounds = array<i64: 1, 1>, scalar_prefetch = 0 : i64, scratch_operands = 1 : i64, tpu.core_type = #tpu.core_type<tc>, window_params = [{transform_indices = @transform_0, window_bounds = array<i64: 8, 256>}, {transform_indices = @transform_1, window_bounds = array<i64: 256, 32>}, {transform_indices = @transform_2, window_bounds = array<i64: 1, 32>}, {transform_indices = @transform_3, window_bounds = array<i64: 8, 32>}, {transform_indices = @transform_4, window_bounds = array<i64: 8, 32>}]} {
    %c0_i32 = arith.constant 0 : i32
    %0 = arith.cmpi eq, %arg1, %c0_i32 : i32
    %1 = arith.extui %0 : i1 to i32
    %c0_i32_0 = arith.constant 0 : i32
    %2 = arith.cmpi ne, %1, %c0_i32_0 : i32
    scf.if %2 {
      %cst_10 = arith.constant 0.000000e+00 : f32
      %12 = vector.broadcast %cst_10 : f32 to vector<8x32xf32>
      %c0_11 = arith.constant 0 : index
      %c0_12 = arith.constant 0 : index
      %13 = vector.load %arg7[%c0_11, %c0_12] : memref<8x32xf32, #tpu.memory_space<vmem>>, vector<8x32xf32>
      tpu.vector_store %arg7[%c0_11, %c0_12], %12 {strides = array<i32>} : memref<8x32xf32, #tpu.memory_space<vmem>>, vector<8x32xf32>,
    } else {
    }
    %c0 = arith.constant 0 : index
    %c0_1 = arith.constant 0 : index
    %3 = vector.load %arg7[%c0, %c0_1] : memref<8x32xf32, #tpu.memory_space<vmem>>, vector<8x32xf32>
    %c0_2 = arith.constant 0 : index
    %c0_3 = arith.constant 0 : index
    %4 = vector.load %arg2[%c0_2, %c0_3] : memref<8x256xbf16, #tpu.memory_space<vmem>>, vector<8x256xbf16>
    %c0_4 = arith.constant 0 : index
    %c0_5 = arith.constant 0 : index
    %5 = vector.load %arg3[%c0_4, %c0_5] : memref<256x32xbf16, #tpu.memory_space<vmem>>, vector<256x32xbf16>
    %cst = arith.constant dense<0.000000e+00> : vector<8x32xf32>
    %6 = tpu.matmul %4, %5, %cst {dimension_numbers = #tpu.dot_dimension_numbers<[1], [0], [0], [1], [0, 0, 1, 1], [], []>} : vector<8x256xbf16>, vector<256x32xbf16>, vector<8x32xf32> -> vector<8x32xf32>
    %7 = arith.addf %3, %6 : vector<8x32xf32>
    %c0_6 = arith.constant 0 : index
    %c0_7 = arith.constant 0 : index
    %8 = vector.load %arg7[%c0_6, %c0_7] : memref<8x32xf32, #tpu.memory_space<vmem>>, vector<8x32xf32>
    tpu.vector_store %arg7[%c0_6, %c0_7], %7 {strides = array<i32>} : memref<8x32xf32, #tpu.memory_space<vmem>>, vector<8x32xf32>,
    %c0_i32_8 = arith.constant 0 : i32
    %9 = arith.cmpi eq, %arg1, %c0_i32_8 : i32
    %10 = arith.extui %9 : i1 to i32
    %c0_i32_9 = arith.constant 0 : i32
    %11 = arith.cmpi ne, %10, %c0_i32_9 : i32
    scf.if %11 {
      %c0_10 = arith.constant 0 : index
      %c0_11 = arith.constant 0 : index
      %12 = vector.load %arg7[%c0_10, %c0_11] : memref<8x32xf32, #tpu.memory_space<vmem>>, vector<8x32xf32>
      %c0_12 = arith.constant 0 : index
      %c0_13 = arith.constant 0 : index
      %13 = vector.load %arg4[%c0_12, %c0_13] : memref<1x32xf32, #tpu.memory_space<vmem>>, vector<1x32xf32>
      %14 = vector.broadcast %13 : vector<1x32xf32> to vector<8x32xf32>
      %15 = arith.addf %12, %14 : vector<8x32xf32>
      %c0_14 = arith.constant 0 : index
      %c0_15 = arith.constant 0 : index
      %16 = vector.load %arg6[%c0_14, %c0_15] : memref<8x32xf32, #tpu.memory_space<vmem>>, vector<8x32xf32>
      tpu.vector_store %arg6[%c0_14, %c0_15], %15 {strides = array<i32>} : memref<8x32xf32, #tpu.memory_space<vmem>>, vector<8x32xf32>,
      %cst_16 = arith.constant 1.000000e+00 : f32
      %17 = vector.broadcast %cst_16 : f32 to vector<8x32xf32>
      %18 = arith.cmpf ogt, %15, %17 : vector<8x32xf32>
      %19 = arith.extui %18 : vector<8x32xi1> to vector<8x32xi32>
      %20 = arith.sitofp %19 : vector<8x32xi32> to vector<8x32xf32>
      %c0_17 = arith.constant 0 : index
      %c0_18 = arith.constant 0 : index
      %21 = vector.load %arg5[%c0_17, %c0_18] : memref<8x32xf32, #tpu.memory_space<vmem>>, vector<8x32xf32>
      tpu.vector_store %arg5[%c0_17, %c0_18], %20 {strides = array<i32>} : memref<8x32xf32, #tpu.memory_space<vmem>>, vector<8x32xf32>,
    } else {
    }
    return
  }
  func.func @transform_0(%arg0: i32, %arg1: i32) -> (i32, i32) {
    %c0_i32 = arith.constant 0 : i32
    %c0_i32_0 = arith.constant 0 : i32
    return %c0_i32, %arg1 : i32, i32
  }
  func.func @transform_1(%arg0: i32, %arg1: i32) -> (i32, i32) {
    %c0_i32 = arith.constant 0 : i32
    return %arg1, %arg0 : i32, i32
  }
  func.func @transform_2(%arg0: i32, %arg1: i32) -> (i32, i32) {
    %c0_i32 = arith.constant 0 : i32
    %c0_i32_0 = arith.constant 0 : i32
    return %c0_i32, %arg0 : i32, i32
  }
  func.func @transform_3(%arg0: i32, %arg1: i32) -> (i32, i32) {
    %c0_i32 = arith.constant 0 : i32
    %c0_i32_0 = arith.constant 0 : i32
    return %c0_i32, %arg0 : i32, i32
  }
  func.func @transform_4(%arg0: i32, %arg1: i32) -> (i32, i32) {
    %c0_i32 = arith.constant 0 : i32
    %c0_i32_0 = arith.constant 0 : i32
    return %c0_i32, %arg0 : i32, i32
  }
}

</mosaic_0001>

<llo_original>
// kernel: topology_net_forward.4
$region0: #{topology_net_forward.4}
  #allocation0 [shape = 'u32[]', space=smem, size = 0x4, offset = 0x4, fixed_abs, tag = 'smem constant byte address 0x4 - core index']
  #allocation1 [shape = 'u32[144,128]{1,0:T(1,128)}', space=vmem, size = 0x12000, scoped, tag = 'internal scratch']
  #allocation2 [shape = 'f32[8,256]{1,0:T(8,128)}', space=vmem, size = 0x2000, scoped, tag = 'scratch operand']
  %s0 = inlined_call_operand.vmem [shape: f32[8,128], index: 0, kind: input, shape index: {}]
  %s1 = inlined_call_operand.hbm [shape: bf16[128,256], index: 1, kind: input, shape index: {}]
  %s2 = inlined_call_operand.hbm [shape: f32[1,256], index: 2, kind: input, shape index: {}]
  %s3 = inlined_call_operand.vmem [shape: bf16[8,256], index: 3, kind: output, shape index: {}]
  %s4 = sld [smem:[#allocation0]]
  $region38: #{topology_net_forward.4} parent=0
    _
  %s6 = ssub.s32 1, %s4
  %s7 = scalar_select 0, %s6, %s4
  $region1: #{topology_net_forward.4} parent=0
    #allocation3 [shape = 'u8[65536]{0}', space=vmem, size = 0x10000, scoped, tag = 'input window, operand 1, single buffered']
    #allocation4 [shape = 's32[1]{0}', space=sflag, size = 0x4, scoped, tag = 'scoped memory for topology_net_forward.4']
    #allocation5 [shape = 'u8[1024]{0}', space=vmem, size = 0x400, scoped, tag = 'input window, operand 2, single buffered']
    #allocation6 [shape = 's32[1]{0}', space=sflag, size = 0x4, scoped, tag = 'scoped memory for topology_net_forward.4']
    %8 = vsyncpa [#allocation4], 0
    %9 = vsyncpa [#allocation6], 0
    // Predicated region
    $region2: #{topology_net_forward.4} parent=1 // pred_check
      _
    $region3: #{topology_net_forward.4} parent=1 // pred_check_branch
      %11 = sbr.rel (0) target = $region5
    $region4: #{topology_net_forward.4} parent=1 // pred_region
      _
    $region5: #{topology_net_forward.4} parent=1 // pred_fallthru
      _
    // Predicated region
    $region6: #{topology_net_forward.4} parent=1 // pred_check
      _
    $region7: #{topology_net_forward.4} parent=1 // pred_check_branch
      %13 = sbr.rel (0) target = $region9
    $region8: #{topology_net_forward.4} parent=1 // pred_region
      %s15 = ssub.s32 2048, 2048
      %16 = vsyncadd [#allocation4], %s15
      %s17 = sshll.u32 [#allocation3], 4
      %s18 = int_to_ptr.vmem [resolvable:$true] %s17
      %23 = dma.hbm_to_vmem [thread:$0]  %s1, 2048, %s18, [#allocation4], 128, 128, 8
    $region9: #{topology_net_forward.4} parent=1 // pred_fallthru
      _
    // Predicated region
    $region10: #{topology_net_forward.4} parent=1 // pred_check
      _
    $region11: #{topology_net_forward.4} parent=1 // pred_check_branch
      %25 = sbr.rel (0) target = $region13
    $region12: #{topology_net_forward.4} parent=1 // pred_region
      %s27 = ssub.s32 32, 32
      %28 = vsyncadd [#allocation6], %s27
      %s30 = sshll.u32 [#allocation5], 4
      %s31 = int_to_ptr.vmem [resolvable:$true] %s30
      %33 = dma.hbm_to_vmem [thread:$0]  %s2, 32, %s31, [#allocation6]
    $region13: #{topology_net_forward.4} parent=1 // pred_fallthru
      _
    // Predicated region
    $region14: #{topology_net_forward.4} parent=1 // pred_check
      _
    $region15: #{topology_net_forward.4} parent=1 // pred_check_branch
      %35 = sbr.rel (0) target = $region17
    $region16: #{topology_net_forward.4} parent=1 // pred_region
      %36 = dma.done [#allocation4], 2048
    $region17: #{topology_net_forward.4} parent=1 // pred_fallthru
      _
    // Predicated region
    $region18: #{topology_net_forward.4} parent=1 // pred_check
      _
    $region19: #{topology_net_forward.4} parent=1 // pred_check_branch
      %38 = sbr.rel (0) target = $region21
    $region20: #{topology_net_forward.4} parent=1 // pred_region
      %39 = dma.done [#allocation6], 32
    $region21: #{topology_net_forward.4} parent=1 // pred_fallthru
      _
    %p41 = scmp.eq.s32.totalorder 0, 0
    // Predicated region
    $region22: #{topology_net_forward.4} parent=1 // pred_check
      %p42 = pneg %p41
    $region23: #{topology_net_forward.4} parent=1 // pred_check_branch
      %44 = sbr.rel (%p42) target = $region25
    $region24: #{topology_net_forward.4} parent=1 // pred_region
      %45 = vst [vmem:[#allocation2] sm:$0xff] 0.0
      %46 = vst [vmem:[#allocation2 + $0x8] sm:$0xff] 0.0
    $region25: #{topology_net_forward.4} parent=1 // pred_fallthru
      _
    %v47 = vld [vmem:[#allocation2] sm:$0xff]
    %v48 = vld [vmem:[#allocation2 + $0x8] sm:$0xff]
    %v49 = vld [vmem:[%s0] sm:$0xff]
    %v50 = vld [vmem:[#allocation3] sm:$0xff]
    %v51 = vld [vmem:[#allocation3 + $0x8] sm:$0xff]
    %v52 = vld [vmem:[#allocation3 + $0x10] sm:$0xff]
    %v53 = vld [vmem:[#allocation3 + $0x18] sm:$0xff]
    %v54 = vld [vmem:[#allocation3 + $0x20] sm:$0xff]
    %v55 = vld [vmem:[#allocation3 + $0x28] sm:$0xff]
    %v56 = vld [vmem:[#allocation3 + $0x30] sm:$0xff]
    %v57 = vld [vmem:[#allocation3 + $0x38] sm:$0xff]
    %v58 = vld [vmem:[#allocation3 + $0x40] sm:$0xff]
    %v59 = vld [vmem:[#allocation3 + $0x48] sm:$0xff]
    %v60 = vld [vmem:[#allocation3 + $0x50] sm:$0xff]
    %v61 = vld [vmem:[#allocation3 + $0x58] sm:$0xff]
    %v62 = vld [vmem:[#allocation3 + $0x60] sm:$0xff]
    %v63 = vld [vmem:[#allocation3 + $0x68] sm:$0xff]
    %v64 = vld [vmem:[#allocation3 + $0x70] sm:$0xff]
    %v65 = vld [vmem:[#allocation3 + $0x78] sm:$0xff]
    %v82 = vunpack.c.l.b16 %v50
    %v83 = vunpack.c.h.b16 %v50
    %v84 = vunpack.c.l.b16 %v51
    %v85 = vunpack.c.h.b16 %v51
    %v86 = vunpack.c.l.b16 %v52
    %v87 = vunpack.c.h.b16 %v52
    %v88 = vunpack.c.l.b16 %v53
    %v89 = vunpack.c.h.b16 %v53
    %v90 = vunpack.c.l.b16 %v54
    %v91 = vunpack.c.h.b16 %v54
    %v92 = vunpack.c.l.b16 %v55
    %v93 = vunpack.c.h.b16 %v55
    %v94 = vunpack.c.l.b16 %v56
    %v95 = vunpack.c.h.b16 %v56
    %v96 = vunpack.c.l.b16 %v57
    %v97 = vunpack.c.h.b16 %v57
    %v98 = vunpack.c.l.b16 %v58
    %v99 = vunpack.c.h.b16 %v58
    %v100 = vunpack.c.l.b16 %v59
    %v101 = vunpack.c.h.b16 %v59
    %v102 = vunpack.c.l.b16 %v60
    %v103 = vunpack.c.h.b16 %v60
    %v104 = vunpack.c.l.b16 %v61
    %v105 = vunpack.c.h.b16 %v61
    %v106 = vunpack.c.l.b16 %v62
    %v107 = vunpack.c.h.b16 %v62
    %v108 = vunpack.c.l.b16 %v63
    %v109 = vunpack.c.h.b16 %v63
    %v110 = vunpack.c.l.b16 %v64
    %v111 = vunpack.c.h.b16 %v64
    %v112 = vunpack.c.l.b16 %v65
    %v113 = vunpack.c.h.b16 %v65
    %v114 = vpack.c.b16 %v84, %v82
    %v115 = vpack.c.b16 %v85, %v83
    %v116 = vpack.c.b16 %v88, %v86
    %v117 = vpack.c.b16 %v89, %v87
    %v118 = vpack.c.b16 %v92, %v90
    %v119 = vpack.c.b16 %v93, %v91
    %v120 = vpack.c.b16 %v96, %v94
    %v121 = vpack.c.b16 %v97, %v95
    %v122 = vpack.c.b16 %v100, %v98
    %v123 = vpack.c.b16 %v101, %v99
    %v124 = vpack.c.b16 %v104, %v102
    %v125 = vpack.c.b16 %v105, %v103
    %v126 = vpack.c.b16 %v108, %v106
    %v127 = vpack.c.b16 %v109, %v107
    %v128 = vpack.c.b16 %v112, %v110
    %v129 = vpack.c.b16 %v113, %v111
    %146 = vmatprep.subr.bf16.mxu0 %v115
    %147 = vmatpush1.bf16.msra.mxu0 %v114
    %148 = vmatprep.subr.bf16.mxu0 %v117
    %149 = vmatpush1.bf16.msra.mxu0 %v116
    %150 = vmatprep.subr.bf16.mxu0 %v119
    %151 = vmatpush1.bf16.msra.mxu0 %v118
    %152 = vmatprep.subr.bf16.mxu0 %v121
    %153 = vmatpush1.bf16.msra.mxu0 %v120
    %154 = vmatprep.subr.bf16.mxu0 %v123
    %155 = vmatpush1.bf16.msra.mxu0 %v122
    %156 = vmatprep.subr.bf16.mxu0 %v125
    %157 = vmatpush1.bf16.msra.mxu0 %v124
    %158 = vmatprep.subr.bf16.mxu0 %v127
    %159 = vmatpush1.bf16.msra.mxu0 %v126
    %160 = vmatprep.subr.bf16.mxu0 %v129
    %161 = vmatpush1.bf16.msra.mxu0 %v128
    %162 = vmatprep.subr.bf16.mxu0 0
    %163 = vmatpush1.bf16.msra.mxu0 0
    %164 = vmatprep.subr.bf16.mxu0 0
    %165 = vmatpush1.bf16.msra.mxu0 0
    %166 = vmatprep.subr.bf16.mxu0 0
    %167 = vmatpush1.bf16.msra.mxu0 0
    %168 = vmatprep.subr.bf16.mxu0 0
    %169 = vmatpush1.bf16.msra.mxu0 0
    %170 = vmatprep.subr.bf16.mxu0 0
    %171 = vmatpush1.bf16.msra.mxu0 0
    %172 = vmatprep.subr.bf16.mxu0 0
    %173 = vmatpush1.bf16.msra.mxu0 0
    %174 = vmatprep.subr.bf16.mxu0 0
    %175 = vmatpush1.bf16.msra.mxu0 0
    %176 = vmatprep.subr.bf16.mxu0 0
    %177 = vmatpush1.bf16.msra.mxu0 0
    %178 = vmatprep.mubr.f32.mxu0 0.0
    %179 = vmatmul.mubr.f32.gmra.mrb[0].mxu0 %v49
    %v180 = vpop.f32.mrb[0].mxu0
    %v181 = vadd.f32 0.0, %v180
    %v182 = vpop.f32.mrb[0].mxu0
    %v183 = vadd.f32 0.0, %v182
    %184 = vdwg.mxu0
    %v185 = vadd.f32 %v47, %v181
    %v186 = vadd.f32 %v48, %v183
    %187 = vst [vmem:[#allocation2] sm:$0xff] %v185
    %188 = vst [vmem:[#allocation2 + $0x8] sm:$0xff] %v186
    // Predicated region
    $region26: #{topology_net_forward.4} parent=1 // pred_check
      %p189 = pneg %p41
    $region27: #{topology_net_forward.4} parent=1 // pred_check_branch
      %191 = sbr.rel (%p189) target = $region29
    $region28: #{topology_net_forward.4} parent=1 // pred_region
      %v192 = vld [vmem:[#allocation2] sm:$0xff]
      %v193 = vld [vmem:[#allocation2 + $0x8] sm:$0xff]
      %v194 = vld [vmem:[#allocation5] sm:$0x3]
      %v196 = vlaneseq
      %v197 = vshrl.u32 %v196, 7
      %v198 = vsub.s32 0, %v197
      %v199 = vrot.slane %v194, %v198
      %v200 = vlaneseq
      %v201 = vshrl.u32 %v200, 7
      %v202 = vsub.s32 1, %v201
      %v203 = vrot.slane %v194, %v202
      %v206 = vadd.f32 %v192, %v199
      %v207 = vadd.f32 %v193, %v203
      %vm208 = vcmp.gt.f32.partialorder %v206, 1.0
      %vm209 = vcmp.gt.f32.partialorder %v207, 1.0
      %v210 = vsel %vm208, 1, 0
      %v211 = vsel %vm209, 1, 0
      %v212 = vcvt.s32.f32 %v210
      %v213 = vcvt.s32.f32 %v211
      %v214 = vpack.c.bf16 %v212, %v212
      %v215 = vpack.c.bf16 %v213, %v213
      %v218 = vunpack.c.l.b16 %v214
      %v219 = vunpack.c.l.b16 %v215
      %v220 = vpack.c.b16 %v219, %v218
      %222 = vst [vmem:[%s3] sm:$0xff] %v220
    $region29: #{topology_net_forward.4} parent=1 // pred_fallthru
      _
    // Predicated region
    $region30: #{topology_net_forward.4} parent=1 // pred_check
      _
    $region31: #{topology_net_forward.4} parent=1 // pred_check_branch
      %224 = sbr.rel (0) target = $region33
    $region32: #{topology_net_forward.4} parent=1 // pred_region
      _
    $region33: #{topology_net_forward.4} parent=1 // pred_fallthru
      _
    // Predicated region
    $region34: #{topology_net_forward.4} parent=1 // pred_check
      _
    $region35: #{topology_net_forward.4} parent=1 // pred_check_branch
      %226 = sbr.rel (0) target = $region37
    $region36: #{topology_net_forward.4} parent=1 // pred_region
      _
    $region37: #{topology_net_forward.4} parent=1 // pred_fallthru
      _
    %227 = vsyncpa [#allocation4], 1
    %228 = vsyncpa [#allocation6], 1

// kernel: topology_net_forward.5
$region0: #{topology_net_forward.5}
  #allocation0 [shape = 'u32[]', space=smem, size = 0x4, offset = 0x4, fixed_abs, tag = 'smem constant byte address 0x4 - core index']
  #allocation1 [shape = 'u32[144,128]{1,0:T(1,128)}', space=vmem, size = 0x12000, scoped, tag = 'internal scratch']
  #allocation2 [shape = 'f32[8,256]{1,0:T(8,128)}', space=vmem, size = 0x2000, scoped, tag = 'scratch operand']
  %s0 = inlined_call_operand.vmem [shape: bf16[8,256], index: 0, kind: input, shape index: {}]
  %s1 = inlined_call_operand.hbm [shape: bf16[256,256], index: 1, kind: input, shape index: {}]
  %s2 = inlined_call_operand.hbm [shape: f32[1,256], index: 2, kind: input, shape index: {}]
  %s3 = inlined_call_operand.vmem [shape: bf16[8,256], index: 3, kind: output, shape index: {}]
  %s4 = sld [smem:[#allocation0]]
  $region38: #{topology_net_forward.5} parent=0
    _
  %s6 = ssub.s32 1, %s4
  %s7 = scalar_select 0, %s6, %s4
  $region1: #{topology_net_forward.5} parent=0
    #allocation3 [shape = 'u8[131072]{0}', space=vmem, size = 0x20000, scoped, tag = 'input window, operand 1, single buffered']
    #allocation4 [shape = 's32[1]{0}', space=sflag, size = 0x4, scoped, tag = 'scoped memory for topology_net_forward.5']
    #allocation5 [shape = 'u8[1024]{0}', space=vmem, size = 0x400, scoped, tag = 'input window, operand 2, single buffered']
    #allocation6 [shape = 's32[1]{0}', space=sflag, size = 0x4, scoped, tag = 'scoped memory for topology_net_forward.5']
    %8 = vsyncpa [#allocation4], 0
    %9 = vsyncpa [#allocation6], 0
    // Predicated region
    $region2: #{topology_net_forward.5} parent=1 // pred_check
      _
    $region3: #{topology_net_forward.5} parent=1 // pred_check_branch
      %11 = sbr.rel (0) target = $region5
    $region4: #{topology_net_forward.5} parent=1 // pred_region
      _
    $region5: #{topology_net_forward.5} parent=1 // pred_fallthru
      _
    // Predicated region
    $region6: #{topology_net_forward.5} parent=1 // pred_check
      _
    $region7: #{topology_net_forward.5} parent=1 // pred_check_branch
      %13 = sbr.rel (0) target = $region9
    $region8: #{topology_net_forward.5} parent=1 // pred_region
      %s15 = ssub.s32 4096, 4096
      %16 = vsyncadd [#allocation4], %s15
      %s17 = sshll.u32 [#allocation3], 4
      %s18 = int_to_ptr.vmem [resolvable:$true] %s17
      %23 = dma.hbm_to_vmem [thread:$0]  %s1, 4096, %s18, [#allocation4], 128, 128, 8
    $region9: #{topology_net_forward.5} parent=1 // pred_fallthru
      _
    // Predicated region
    $region10: #{topology_net_forward.5} parent=1 // pred_check
      _
    $region11: #{topology_net_forward.5} parent=1 // pred_check_branch
      %25 = sbr.rel (0) target = $region13
    $region12: #{topology_net_forward.5} parent=1 // pred_region
      %s27 = ssub.s32 32, 32
      %28 = vsyncadd [#allocation6], %s27
      %s30 = sshll.u32 [#allocation5], 4
      %s31 = int_to_ptr.vmem [resolvable:$true] %s30
      %33 = dma.hbm_to_vmem [thread:$0]  %s2, 32, %s31, [#allocation6]
    $region13: #{topology_net_forward.5} parent=1 // pred_fallthru
      _
    // Predicated region
    $region14: #{topology_net_forward.5} parent=1 // pred_check
      _
    $region15: #{topology_net_forward.5} parent=1 // pred_check_branch
      %35 = sbr.rel (0) target = $region17
    $region16: #{topology_net_forward.5} parent=1 // pred_region
      %36 = dma.done [#allocation4], 4096
    $region17: #{topology_net_forward.5} parent=1 // pred_fallthru
      _
    // Predicated region
    $region18: #{topology_net_forward.5} parent=1 // pred_check
      _
    $region19: #{topology_net_forward.5} parent=1 // pred_check_branch
      %38 = sbr.rel (0) target = $region21
    $region20: #{topology_net_forward.5} parent=1 // pred_region
      %39 = dma.done [#allocation6], 32
    $region21: #{topology_net_forward.5} parent=1 // pred_fallthru
      _
    %p40 = scmp.eq.s32.totalorder 0, 0
    // Predicated region
    $region22: #{topology_net_forward.5} parent=1 // pred_check
      %p41 = pneg %p40
    $region23: #{topology_net_forward.5} parent=1 // pred_check_branch
      %43 = sbr.rel (%p41) target = $region25
    $region24: #{topology_net_forward.5} parent=1 // pred_region
      %44 = vst [vmem:[#allocation2] sm:$0xff] 0.0
      %45 = vst [vmem:[#allocation2 + $0x8] sm:$0xff] 0.0
    $region25: #{topology_net_forward.5} parent=1 // pred_fallthru
      _
    %v46 = vld [vmem:[#allocation2] sm:$0xff]
    %v47 = vld [vmem:[#allocation2 + $0x8] sm:$0xff]
    %v48 = vld [vmem:[%s0] sm:$0xff]
    %v49 = vld [vmem:[#allocation3] sm:$0xff]
    %v50 = vld [vmem:[#allocation3 + $0x8] sm:$0xff]
    %v51 = vld [vmem:[#allocation3 + $0x10] sm:$0xff]
    %v52 = vld [vmem:[#allocation3 + $0x18] sm:$0xff]
    %v53 = vld [vmem:[#allocation3 + $0x20] sm:$0xff]
    %v54 = vld [vmem:[#allocation3 + $0x28] sm:$0xff]
    %v55 = vld [vmem:[#allocation3 + $0x30] sm:$0xff]
    %v56 = vld [vmem:[#allocation3 + $0x38] sm:$0xff]
    %v57 = vld [vmem:[#allocation3 + $0x40] sm:$0xff]
    %v58 = vld [vmem:[#allocation3 + $0x48] sm:$0xff]
    %v59 = vld [vmem:[#allocation3 + $0x50] sm:$0xff]
    %v60 = vld [vmem:[#allocation3 + $0x58] sm:$0xff]
    %v61 = vld [vmem:[#allocation3 + $0x60] sm:$0xff]
    %v62 = vld [vmem:[#allocation3 + $0x68] sm:$0xff]
    %v63 = vld [vmem:[#allocation3 + $0x70] sm:$0xff]
    %v64 = vld [vmem:[#allocation3 + $0x78] sm:$0xff]
    %v65 = vld [vmem:[#allocation3 + $0x80] sm:$0xff]
    %v66 = vld [vmem:[#allocation3 + $0x88] sm:$0xff]
    %v67 = vld [vmem:[#allocation3 + $0x90] sm:$0xff]
    %v68 = vld [vmem:[#allocation3 + $0x98] sm:$0xff]
    %v69 = vld [vmem:[#allocation3 + $0xa0] sm:$0xff]
    %v70 = vld [vmem:[#allocation3 + $0xa8] sm:$0xff]
    %v71 = vld [vmem:[#allocation3 + $0xb0] sm:$0xff]
    %v72 = vld [vmem:[#allocation3 + $0xb8] sm:$0xff]
    %v73 = vld [vmem:[#allocation3 + $0xc0] sm:$0xff]
    %v74 = vld [vmem:[#allocation3 + $0xc8] sm:$0xff]
    %v75 = vld [vmem:[#allocation3 + $0xd0] sm:$0xff]
    %v76 = vld [vmem:[#allocation3 + $0xd8] sm:$0xff]
    %v77 = vld [vmem:[#allocation3 + $0xe0] sm:$0xff]
    %v78 = vld [vmem:[#allocation3 + $0xe8] sm:$0xff]
    %v79 = vld [vmem:[#allocation3 + $0xf0] sm:$0xff]
    %v80 = vld [vmem:[#allocation3 + $0xf8] sm:$0xff]
    %v82 = vunpack.c.l.b16 %v48
    %v83 = vunpack.c.h.b16 %v48
    %v84 = vpack.c.b16 %v82, %v82
    %v85 = vpack.c.b16 %v83, %v83
    %v120 = vunpack.c.l.b16 %v49
    %v121 = vunpack.c.h.b16 %v49
    %v122 = vunpack.c.l.b16 %v50
    %v123 = vunpack.c.h.b16 %v50
    %v124 = vunpack.c.l.b16 %v51
    %v125 = vunpack.c.h.b16 %v51
    %v126 = vunpack.c.l.b16 %v52
    %v127 = vunpack.c.h.b16 %v52
    %v128 = vunpack.c.l.b16 %v53
    %v129 = vunpack.c.h.b16 %v53
    %v130 = vunpack.c.l.b16 %v54
    %v131 = vunpack.c.h.b16 %v54
    %v132 = vunpack.c.l.b16 %v55
    %v133 = vunpack.c.h.b16 %v55
    %v134 = vunpack.c.l.b16 %v56
    %v135 = vunpack.c.h.b16 %v56
    %v136 = vunpack.c.l.b16 %v57
    %v137 = vunpack.c.h.b16 %v57
    %v138 = vunpack.c.l.b16 %v58
    %v139 = vunpack.c.h.b16 %v58
    %v140 = vunpack.c.l.b16 %v59
    %v141 = vunpack.c.h.b16 %v59
    %v142 = vunpack.c.l.b16 %v60
    %v143 = vunpack.c.h.b16 %v60
    %v144 = vunpack.c.l.b16 %v61
    %v145 = vunpack.c.h.b16 %v61
    %v146 = vunpack.c.l.b16 %v62
    %v147 = vunpack.c.h.b16 %v62
    %v148 = vunpack.c.l.b16 %v63
    %v149 = vunpack.c.h.b16 %v63
    %v150 = vunpack.c.l.b16 %v64
    %v151 = vunpack.c.h.b16 %v64
    %v152 = vunpack.c.l.b16 %v65
    %v153 = vunpack.c.h.b16 %v65
    %v154 = vunpack.c.l.b16 %v66
    %v155 = vunpack.c.h.b16 %v66
    %v156 = vunpack.c.l.b16 %v67
    %v157 = vunpack.c.h.b16 %v67
    %v158 = vunpack.c.l.b16 %v68
    %v159 = vunpack.c.h.b16 %v68
    %v160 = vunpack.c.l.b16 %v69
    %v161 = vunpack.c.h.b16 %v69
    %v162 = vunpack.c.l.b16 %v70
    %v163 = vunpack.c.h.b16 %v70
    %v164 = vunpack.c.l.b16 %v71
    %v165 = vunpack.c.h.b16 %v71
    %v166 = vunpack.c.l.b16 %v72
    %v167 = vunpack.c.h.b16 %v72
    %v168 = vunpack.c.l.b16 %v73
    %v169 = vunpack.c.h.b16 %v73
    %v170 = vunpack.c.l.b16 %v74
    %v171 = vunpack.c.h.b16 %v74
    %v172 = vunpack.c.l.b16 %v75
    %v173 = vunpack.c.h.b16 %v75
    %v174 = vunpack.c.l.b16 %v76
    %v175 = vunpack.c.h.b16 %v76
    %v176 = vunpack.c.l.b16 %v77
    %v177 = vunpack.c.h.b16 %v77
    %v178 = vunpack.c.l.b16 %v78
    %v179 = vunpack.c.h.b16 %v78
    %v180 = vunpack.c.l.b16 %v79
    %v181 = vunpack.c.h.b16 %v79
    %v182 = vunpack.c.l.b16 %v80
    %v183 = vunpack.c.h.b16 %v80
    %v184 = vpack.c.b16 %v122, %v120
    %v185 = vpack.c.b16 %v123, %v121
    %v186 = vpack.c.b16 %v126, %v124
    %v187 = vpack.c.b16 %v127, %v125
    %v188 = vpack.c.b16 %v130, %v128
    %v189 = vpack.c.b16 %v131, %v129
    %v190 = vpack.c.b16 %v134, %v132
    %v191 = vpack.c.b16 %v135, %v133
    %v192 = vpack.c.b16 %v138, %v136
    %v193 = vpack.c.b16 %v139, %v137
    %v194 = vpack.c.b16 %v142, %v140
    %v195 = vpack.c.b16 %v143, %v141
    %v196 = vpack.c.b16 %v146, %v144
    %v197 = vpack.c.b16 %v147, %v145
    %v198 = vpack.c.b16 %v150, %v148
    %v199 = vpack.c.b16 %v151, %v149
    %v200 = vpack.c.b16 %v154, %v152
    %v201 = vpack.c.b16 %v155, %v153
    %v202 = vpack.c.b16 %v158, %v156
    %v203 = vpack.c.b16 %v159, %v157
    %v204 = vpack.c.b16 %v162, %v160
    %v205 = vpack.c.b16 %v163, %v161
    %v206 = vpack.c.b16 %v166, %v164
    %v207 = vpack.c.b16 %v167, %v165
    %v208 = vpack.c.b16 %v170, %v168
    %v209 = vpack.c.b16 %v171, %v169
    %v210 = vpack.c.b16 %v174, %v172
    %v211 = vpack.c.b16 %v175, %v173
    %v212 = vpack.c.b16 %v178, %v176
    %v213 = vpack.c.b16 %v179, %v177
    %v214 = vpack.c.b16 %v182, %v180
    %v215 = vpack.c.b16 %v183, %v181
    %248 = vmatprep.subr.bf16.mxu0 %v185
    %249 = vmatpush1.bf16.msra.mxu0 %v184
    %250 = vmatprep.subr.bf16.mxu0 %v187
    %251 = vmatpush1.bf16.msra.mxu0 %v186
    %252 = vmatprep.subr.bf16.mxu0 %v189
    %253 = vmatpush1.bf16.msra.mxu0 %v188
    %254 = vmatprep.subr.bf16.mxu0 %v191
    %255 = vmatpush1.bf16.msra.mxu0 %v190
    %256 = vmatprep.subr.bf16.mxu0 %v193
    %257 = vmatpush1.bf16.msra.mxu0 %v192
    %258 = vmatprep.subr.bf16.mxu0 %v195
    %259 = vmatpush1.bf16.msra.mxu0 %v194
    %260 = vmatprep.subr.bf16.mxu0 %v197
    %261 = vmatpush1.bf16.msra.mxu0 %v196
    %262 = vmatprep.subr.bf16.mxu0 %v199
    %263 = vmatpush1.bf16.msra.mxu0 %v198
    %264 = vmatprep.subr.bf16.mxu0 %v201
    %265 = vmatpush1.bf16.msra.mxu0 %v200
    %266 = vmatprep.subr.bf16.mxu0 %v203
    %267 = vmatpush1.bf16.msra.mxu0 %v202
    %268 = vmatprep.subr.bf16.mxu0 %v205
    %269 = vmatpush1.bf16.msra.mxu0 %v204
    %270 = vmatprep.subr.bf16.mxu0 %v207
    %271 = vmatpush1.bf16.msra.mxu0 %v206
    %272 = vmatprep.subr.bf16.mxu0 %v209
    %273 = vmatpush1.bf16.msra.mxu0 %v208
    %274 = vmatprep.subr.bf16.mxu0 %v211
    %275 = vmatpush1.bf16.msra.mxu0 %v210
    %276 = vmatprep.subr.bf16.mxu0 %v213
    %277 = vmatpush1.bf16.msra.mxu0 %v212
    %278 = vmatprep.subr.bf16.mxu0 %v215
    %279 = vmatpush1.bf16.msra.mxu0 %v214
    %280 = vmatprep.mubr.bf16.mxu0 %v85
    %281 = vmatmul.mubr.bf16.gmra.mrb[0].mxu0 %v84
    %v282 = vpop.f32.mrb[0].mxu0
    %v283 = vadd.f32 0.0, %v282
    %v284 = vpop.f32.mrb[0].mxu0
    %v285 = vadd.f32 0.0, %v284
    %v286 = vpop.f32.mrb[0].mxu0
    %v287 = vpop.f32.mrb[0].mxu0
    %288 = vdwg.mxu0
    %v289 = vadd.f32 %v46, %v283
    %v290 = vadd.f32 %v47, %v285
    %291 = vst [vmem:[#allocation2] sm:$0xff] %v289
    %292 = vst [vmem:[#allocation2 + $0x8] sm:$0xff] %v290
    // Predicated region
    $region26: #{topology_net_forward.5} parent=1 // pred_check
      %p293 = pneg %p40
    $region27: #{topology_net_forward.5} parent=1 // pred_check_branch
      %295 = sbr.rel (%p293) target = $region29
    $region28: #{topology_net_forward.5} parent=1 // pred_region
      %v296 = vld [vmem:[#allocation2] sm:$0xff]
      %v297 = vld [vmem:[#allocation2 + $0x8] sm:$0xff]
      %v298 = vld [vmem:[#allocation5] sm:$0x3]
      %v300 = vlaneseq
      %v301 = vshrl.u32 %v300, 7
      %v302 = vsub.s32 0, %v301
      %v303 = vrot.slane %v298, %v302
      %v304 = vlaneseq
      %v305 = vshrl.u32 %v304, 7
      %v306 = vsub.s32 1, %v305
      %v307 = vrot.slane %v298, %v306
      %v310 = vadd.f32 %v296, %v303
      %v311 = vadd.f32 %v297, %v307
      %vm312 = vcmp.gt.f32.partialorder %v310, 1.0
      %vm313 = vcmp.gt.f32.partialorder %v311, 1.0
      %v314 = vsel %vm312, 1, 0
      %v315 = vsel %vm313, 1, 0
      %v316 = vcvt.s32.f32 %v314
      %v317 = vcvt.s32.f32 %v315
      %v318 = vpack.c.bf16 %v316, %v316
      %v319 = vpack.c.bf16 %v317, %v317
      %v322 = vunpack.c.l.b16 %v318
      %v323 = vunpack.c.l.b16 %v319
      %v324 = vpack.c.b16 %v323, %v322
      %326 = vst [vmem:[%s3] sm:$0xff] %v324
    $region29: #{topology_net_forward.5} parent=1 // pred_fallthru
      _
    // Predicated region
    $region30: #{topology_net_forward.5} parent=1 // pred_check
      _
    $region31: #{topology_net_forward.5} parent=1 // pred_check_branch
      %328 = sbr.rel (0) target = $region33
    $region32: #{topology_net_forward.5} parent=1 // pred_region
      _
    $region33: #{topology_net_forward.5} parent=1 // pred_fallthru
      _
    // Predicated region
    $region34: #{topology_net_forward.5} parent=1 // pred_check
      _
    $region35: #{topology_net_forward.5} parent=1 // pred_check_branch
      %330 = sbr.rel (0) target = $region37
    $region36: #{topology_net_forward.5} parent=1 // pred_region
      _
    $region37: #{topology_net_forward.5} parent=1 // pred_fallthru
      _
    %331 = vsyncpa [#allocation4], 1
    %332 = vsyncpa [#allocation6], 1

// kernel: topology_net_forward.6
$region0: #{topology_net_forward.6}
  #allocation0 [shape = 'u32[]', space=smem, size = 0x4, offset = 0x4, fixed_abs, tag = 'smem constant byte address 0x4 - core index']
  #allocation1 [shape = 'u32[144,128]{1,0:T(1,128)}', space=vmem, size = 0x12000, scoped, tag = 'internal scratch']
  #allocation2 [shape = 'f32[8,256]{1,0:T(8,128)}', space=vmem, size = 0x2000, scoped, tag = 'scratch operand']
  %s0 = inlined_call_operand.vmem [shape: bf16[8,256], index: 0, kind: input, shape index: {}]
  %s1 = inlined_call_operand.vmem [shape: bf16[256,256], index: 1, kind: input, shape index: {}]
  %s2 = inlined_call_operand.vmem [shape: f32[1,256], index: 2, kind: input, shape index: {}]
  %s3 = inlined_call_operand.vmem [shape: bf16[8,256], index: 3, kind: output, shape index: {}]
  %s4 = sld [smem:[#allocation0]]
  $region30: #{topology_net_forward.6} parent=0
    _
  %s6 = ssub.s32 1, %s4
  %s7 = scalar_select 0, %s6, %s4
  // Predicated region
  $region2: #{topology_net_forward.6} parent=0 // pred_check
    _
  $region3: #{topology_net_forward.6} parent=0 // pred_check_branch
    %9 = sbr.rel (0) target = $region5
  $region4: #{topology_net_forward.6} parent=0 // pred_region
    _
  $region5: #{topology_net_forward.6} parent=0 // pred_fallthru
    _
  // Predicated region
  $region6: #{topology_net_forward.6} parent=0 // pred_check
    _
  $region7: #{topology_net_forward.6} parent=0 // pred_check_branch
    %11 = sbr.rel (0) target = $region9
  $region8: #{topology_net_forward.6} parent=0 // pred_region
    _
  $region9: #{topology_net_forward.6} parent=0 // pred_fallthru
    _
  // Predicated region
  $region10: #{topology_net_forward.6} parent=0 // pred_check
    _
  $region11: #{topology_net_forward.6} parent=0 // pred_check_branch
    %13 = sbr.rel (0) target = $region13
  $region12: #{topology_net_forward.6} parent=0 // pred_region
    _
  $region13: #{topology_net_forward.6} parent=0 // pred_fallthru
    _
  %p14 = scmp.eq.s32.totalorder 0, 0
  // Predicated region
  $region14: #{topology_net_forward.6} parent=0 // pred_check
    %p15 = pneg %p14
  $region15: #{topology_net_forward.6} parent=0 // pred_check_branch
    %17 = sbr.rel (%p15) target = $region17
  $region16: #{topology_net_forward.6} parent=0 // pred_region
    %18 = vst [vmem:[#allocation2] sm:$0xff] 0.0
    %19 = vst [vmem:[#allocation2 + $0x8] sm:$0xff] 0.0
  $region17: #{topology_net_forward.6} parent=0 // pred_fallthru
    _
  %v20 = vld [vmem:[#allocation2] sm:$0xff]
  %v21 = vld [vmem:[#allocation2 + $0x8] sm:$0xff]
  %v22 = vld [vmem:[%s0] sm:$0xff]
  %v23 = vld [vmem:[%s1] sm:$0xff]
  %v24 = vld [vmem:[%s1 + $0x8] sm:$0xff]
  %v25 = vld [vmem:[%s1 + $0x10] sm:$0xff]
  %v26 = vld [vmem:[%s1 + $0x18] sm:$0xff]
  %v27 = vld [vmem:[%s1 + $0x20] sm:$0xff]
  %v28 = vld [vmem:[%s1 + $0x28] sm:$0xff]
  %v29 = vld [vmem:[%s1 + $0x30] sm:$0xff]
  %v30 = vld [vmem:[%s1 + $0x38] sm:$0xff]
  %v31 = vld [vmem:[%s1 + $0x40] sm:$0xff]
  %v32 = vld [vmem:[%s1 + $0x48] sm:$0xff]
  %v33 = vld [vmem:[%s1 + $0x50] sm:$0xff]
  %v34 = vld [vmem:[%s1 + $0x58] sm:$0xff]
  %v35 = vld [vmem:[%s1 + $0x60] sm:$0xff]
  %v36 = vld [vmem:[%s1 + $0x68] sm:$0xff]
  %v37 = vld [vmem:[%s1 + $0x70] sm:$0xff]
  %v38 = vld [vmem:[%s1 + $0x78] sm:$0xff]
  %v39 = vld [vmem:[%s1 + $0x80] sm:$0xff]
  %v40 = vld [vmem:[%s1 + $0x88] sm:$0xff]
  %v41 = vld [vmem:[%s1 + $0x90] sm:$0xff]
  %v42 = vld [vmem:[%s1 + $0x98] sm:$0xff]
  %v43 = vld [vmem:[%s1 + $0xa0] sm:$0xff]
  %v44 = vld [vmem:[%s1 + $0xa8] sm:$0xff]
  %v45 = vld [vmem:[%s1 + $0xb0] sm:$0xff]
  %v46 = vld [vmem:[%s1 + $0xb8] sm:$0xff]
  %v47 = vld [vmem:[%s1 + $0xc0] sm:$0xff]
  %v48 = vld [vmem:[%s1 + $0xc8] sm:$0xff]
  %v49 = vld [vmem:[%s1 + $0xd0] sm:$0xff]
  %v50 = vld [vmem:[%s1 + $0xd8] sm:$0xff]
  %v51 = vld [vmem:[%s1 + $0xe0] sm:$0xff]
  %v52 = vld [vmem:[%s1 + $0xe8] sm:$0xff]
  %v53 = vld [vmem:[%s1 + $0xf0] sm:$0xff]
  %v54 = vld [vmem:[%s1 + $0xf8] sm:$0xff]
  %v56 = vunpack.c.l.b16 %v22
  %v57 = vunpack.c.h.b16 %v22
  %v58 = vpack.c.b16 %v56, %v56
  %v59 = vpack.c.b16 %v57, %v57
  %v94 = vunpack.c.l.b16 %v23
  %v95 = vunpack.c.h.b16 %v23
  %v96 = vunpack.c.l.b16 %v24
  %v97 = vunpack.c.h.b16 %v24
  %v98 = vunpack.c.l.b16 %v25
  %v99 = vunpack.c.h.b16 %v25
  %v100 = vunpack.c.l.b16 %v26
  %v101 = vunpack.c.h.b16 %v26
  %v102 = vunpack.c.l.b16 %v27
  %v103 = vunpack.c.h.b16 %v27
  %v104 = vunpack.c.l.b16 %v28
  %v105 = vunpack.c.h.b16 %v28
  %v106 = vunpack.c.l.b16 %v29
  %v107 = vunpack.c.h.b16 %v29
  %v108 = vunpack.c.l.b16 %v30
  %v109 = vunpack.c.h.b16 %v30
  %v110 = vunpack.c.l.b16 %v31
  %v111 = vunpack.c.h.b16 %v31
  %v112 = vunpack.c.l.b16 %v32
  %v113 = vunpack.c.h.b16 %v32
  %v114 = vunpack.c.l.b16 %v33
  %v115 = vunpack.c.h.b16 %v33
  %v116 = vunpack.c.l.b16 %v34
  %v117 = vunpack.c.h.b16 %v34
  %v118 = vunpack.c.l.b16 %v35
  %v119 = vunpack.c.h.b16 %v35
  %v120 = vunpack.c.l.b16 %v36
  %v121 = vunpack.c.h.b16 %v36
  %v122 = vunpack.c.l.b16 %v37
  %v123 = vunpack.c.h.b16 %v37
  %v124 = vunpack.c.l.b16 %v38
  %v125 = vunpack.c.h.b16 %v38
  %v126 = vunpack.c.l.b16 %v39
  %v127 = vunpack.c.h.b16 %v39
  %v128 = vunpack.c.l.b16 %v40
  %v129 = vunpack.c.h.b16 %v40
  %v130 = vunpack.c.l.b16 %v41
  %v131 = vunpack.c.h.b16 %v41
  %v132 = vunpack.c.l.b16 %v42
  %v133 = vunpack.c.h.b16 %v42
  %v134 = vunpack.c.l.b16 %v43
  %v135 = vunpack.c.h.b16 %v43
  %v136 = vunpack.c.l.b16 %v44
  %v137 = vunpack.c.h.b16 %v44
  %v138 = vunpack.c.l.b16 %v45
  %v139 = vunpack.c.h.b16 %v45
  %v140 = vunpack.c.l.b16 %v46
  %v141 = vunpack.c.h.b16 %v46
  %v142 = vunpack.c.l.b16 %v47
  %v143 = vunpack.c.h.b16 %v47
  %v144 = vunpack.c.l.b16 %v48
  %v145 = vunpack.c.h.b16 %v48
  %v146 = vunpack.c.l.b16 %v49
  %v147 = vunpack.c.h.b16 %v49
  %v148 = vunpack.c.l.b16 %v50
  %v149 = vunpack.c.h.b16 %v50
  %v150 = vunpack.c.l.b16 %v51
  %v151 = vunpack.c.h.b16 %v51
  %v152 = vunpack.c.l.b16 %v52
  %v153 = vunpack.c.h.b16 %v52
  %v154 = vunpack.c.l.b16 %v53
  %v155 = vunpack.c.h.b16 %v53
  %v156 = vunpack.c.l.b16 %v54
  %v157 = vunpack.c.h.b16 %v54
  %v158 = vpack.c.b16 %v96, %v94
  %v159 = vpack.c.b16 %v97, %v95
  %v160 = vpack.c.b16 %v100, %v98
  %v161 = vpack.c.b16 %v101, %v99
  %v162 = vpack.c.b16 %v104, %v102
  %v163 = vpack.c.b16 %v105, %v103
  %v164 = vpack.c.b16 %v108, %v106
  %v165 = vpack.c.b16 %v109, %v107
  %v166 = vpack.c.b16 %v112, %v110
  %v167 = vpack.c.b16 %v113, %v111
  %v168 = vpack.c.b16 %v116, %v114
  %v169 = vpack.c.b16 %v117, %v115
  %v170 = vpack.c.b16 %v120, %v118
  %v171 = vpack.c.b16 %v121, %v119
  %v172 = vpack.c.b16 %v124, %v122
  %v173 = vpack.c.b16 %v125, %v123
  %v174 = vpack.c.b16 %v128, %v126
  %v175 = vpack.c.b16 %v129, %v127
  %v176 = vpack.c.b16 %v132, %v130
  %v177 = vpack.c.b16 %v133, %v131
  %v178 = vpack.c.b16 %v136, %v134
  %v179 = vpack.c.b16 %v137, %v135
  %v180 = vpack.c.b16 %v140, %v138
  %v181 = vpack.c.b16 %v141, %v139
  %v182 = vpack.c.b16 %v144, %v142
  %v183 = vpack.c.b16 %v145, %v143
  %v184 = vpack.c.b16 %v148, %v146
  %v185 = vpack.c.b16 %v149, %v147
  %v186 = vpack.c.b16 %v152, %v150
  %v187 = vpack.c.b16 %v153, %v151
  %v188 = vpack.c.b16 %v156, %v154
  %v189 = vpack.c.b16 %v157, %v155
  %222 = vmatprep.subr.bf16.mxu0 %v159
  %223 = vmatpush1.bf16.msra.mxu0 %v158
  %224 = vmatprep.subr.bf16.mxu0 %v161
  %225 = vmatpush1.bf16.msra.mxu0 %v160
  %226 = vmatprep.subr.bf16.mxu0 %v163
  %227 = vmatpush1.bf16.msra.mxu0 %v162
  %228 = vmatprep.subr.bf16.mxu0 %v165
  %229 = vmatpush1.bf16.msra.mxu0 %v164
  %230 = vmatprep.subr.bf16.mxu0 %v167
  %231 = vmatpush1.bf16.msra.mxu0 %v166
  %232 = vmatprep.subr.bf16.mxu0 %v169
  %233 = vmatpush1.bf16.msra.mxu0 %v168
  %234 = vmatprep.subr.bf16.mxu0 %v171
  %235 = vmatpush1.bf16.msra.mxu0 %v170
  %236 = vmatprep.subr.bf16.mxu0 %v173
  %237 = vmatpush1.bf16.msra.mxu0 %v172
  %238 = vmatprep.subr.bf16.mxu0 %v175
  %239 = vmatpush1.bf16.msra.mxu0 %v174
  %240 = vmatprep.subr.bf16.mxu0 %v177
  %241 = vmatpush1.bf16.msra.mxu0 %v176
  %242 = vmatprep.subr.bf16.mxu0 %v179
  %243 = vmatpush1.bf16.msra.mxu0 %v178
  %244 = vmatprep.subr.bf16.mxu0 %v181
  %245 = vmatpush1.bf16.msra.mxu0 %v180
  %246 = vmatprep.subr.bf16.mxu0 %v183
  %247 = vmatpush1.bf16.msra.mxu0 %v182
  %248 = vmatprep.subr.bf16.mxu0 %v185
  %249 = vmatpush1.bf16.msra.mxu0 %v184
  %250 = vmatprep.subr.bf16.mxu0 %v187
  %251 = vmatpush1.bf16.msra.mxu0 %v186
  %252 = vmatprep.subr.bf16.mxu0 %v189
  %253 = vmatpush1.bf16.msra.mxu0 %v188
  %254 = vmatprep.mubr.bf16.mxu0 %v59
  %255 = vmatmul.mubr.bf16.gmra.mrb[0].mxu0 %v58
  %v256 = vpop.f32.mrb[0].mxu0
  %v257 = vadd.f32 0.0, %v256
  %v258 = vpop.f32.mrb[0].mxu0
  %v259 = vadd.f32 0.0, %v258
  %v260 = vpop.f32.mrb[0].mxu0
  %v261 = vpop.f32.mrb[0].mxu0
  %262 = vdwg.mxu0
  %v263 = vadd.f32 %v20, %v257
  %v264 = vadd.f32 %v21, %v259
  %265 = vst [vmem:[#allocation2] sm:$0xff] %v263
  %266 = vst [vmem:[#allocation2 + $0x8] sm:$0xff] %v264
  // Predicated region
  $region18: #{topology_net_forward.6} parent=0 // pred_check
    %p267 = pneg %p14
  $region19: #{topology_net_forward.6} parent=0 // pred_check_branch
    %269 = sbr.rel (%p267) target = $region21
  $region20: #{topology_net_forward.6} parent=0 // pred_region
    %v270 = vld [vmem:[#allocation2] sm:$0xff]
    %v271 = vld [vmem:[#allocation2 + $0x8] sm:$0xff]
    %v272 = vld [vmem:[%s2] sm:$0x3]
    %v274 = vlaneseq
    %v275 = vshrl.u32 %v274, 7
    %v276 = vsub.s32 0, %v275
    %v277 = vrot.slane %v272, %v276
    %v278 = vlaneseq
    %v279 = vshrl.u32 %v278, 7
    %v280 = vsub.s32 1, %v279
    %v281 = vrot.slane %v272, %v280
    %v284 = vadd.f32 %v270, %v277
    %v285 = vadd.f32 %v271, %v281
    %vm286 = vcmp.gt.f32.partialorder %v284, 1.0
    %vm287 = vcmp.gt.f32.partialorder %v285, 1.0
    %v288 = vsel %vm286, 1, 0
    %v289 = vsel %vm287, 1, 0
    %v290 = vcvt.s32.f32 %v288
    %v291 = vcvt.s32.f32 %v289
    %v292 = vpack.c.bf16 %v290, %v290
    %v293 = vpack.c.bf16 %v291, %v291
    %v296 = vunpack.c.l.b16 %v292
    %v297 = vunpack.c.l.b16 %v293
    %v298 = vpack.c.b16 %v297, %v296
    %300 = vst [vmem:[%s3] sm:$0xff] %v298
  $region21: #{topology_net_forward.6} parent=0 // pred_fallthru
    _
  // Predicated region
  $region22: #{topology_net_forward.6} parent=0 // pred_check
    _
  $region23: #{topology_net_forward.6} parent=0 // pred_check_branch
    %302 = sbr.rel (0) target = $region25
  $region24: #{topology_net_forward.6} parent=0 // pred_region
    _
  $region25: #{topology_net_forward.6} parent=0 // pred_fallthru
    _
  // Predicated region
  $region26: #{topology_net_forward.6} parent=0 // pred_check
    _
  $region27: #{topology_net_forward.6} parent=0 // pred_check_branch
    %304 = sbr.rel (0) target = $region29
  $region28: #{topology_net_forward.6} parent=0 // pred_region
    _
  $region29: #{topology_net_forward.6} parent=0 // pred_fallthru
    _

// kernel: topology_net_forward.7
$region0: #{topology_net_forward.7}
  #allocation0 [shape = 'u32[]', space=smem, size = 0x4, offset = 0x4, fixed_abs, tag = 'smem constant byte address 0x4 - core index']
  #allocation1 [shape = 'u32[144,128]{1,0:T(1,128)}', space=vmem, size = 0x12000, scoped, tag = 'internal scratch']
  #allocation2 [shape = 'f32[8,32]{1,0:T(8,128)}', space=vmem, size = 0x1000, scoped, tag = 'scratch operand']
  %s0 = inlined_call_operand.vmem [shape: bf16[8,256], index: 0, kind: input, shape index: {}]
  %s1 = inlined_call_operand.vmem [shape: bf16[256,32], index: 1, kind: input, shape index: {}]
  %s2 = inlined_call_operand.vmem [shape: f32[1,32], index: 2, kind: input, shape index: {}]
  %s3 = inlined_call_operand.vmem [shape: f32[8,32], index: 3, kind: output, shape index: {0}]
  %s4 = inlined_call_operand.vmem [shape: f32[8,32], index: 4, kind: output, shape index: {1}]
  %5 = xla_tuple %s3, %s4
  %s6 = sld [smem:[#allocation0]]
  $region38: #{topology_net_forward.7} parent=0
    _
  %s8 = ssub.s32 1, %s6
  %s9 = scalar_select 0, %s8, %s6
  // Predicated region
  $region2: #{topology_net_forward.7} parent=0 // pred_check
    _
  $region3: #{topology_net_forward.7} parent=0 // pred_check_branch
    %11 = sbr.rel (0) target = $region5
  $region4: #{topology_net_forward.7} parent=0 // pred_region
    _
  $region5: #{topology_net_forward.7} parent=0 // pred_fallthru
    _
  // Predicated region
  $region6: #{topology_net_forward.7} parent=0 // pred_check
    _
  $region7: #{topology_net_forward.7} parent=0 // pred_check_branch
    %13 = sbr.rel (0) target = $region9
  $region8: #{topology_net_forward.7} parent=0 // pred_region
    _
  $region9: #{topology_net_forward.7} parent=0 // pred_fallthru
    _
  // Predicated region
  $region10: #{topology_net_forward.7} parent=0 // pred_check
    _
  $region11: #{topology_net_forward.7} parent=0 // pred_check_branch
    %15 = sbr.rel (0) target = $region13
  $region12: #{topology_net_forward.7} parent=0 // pred_region
    _
  $region13: #{topology_net_forward.7} parent=0 // pred_fallthru
    _
  %p17 = scmp.eq.s32.totalorder 0, 0
  // Predicated region
  $region14: #{topology_net_forward.7} parent=0 // pred_check
    %p18 = pneg %p17
  $region15: #{topology_net_forward.7} parent=0 // pred_check_branch
    %20 = sbr.rel (%p18) target = $region17
  $region16: #{topology_net_forward.7} parent=0 // pred_region
    %vm21 = vcmask 261120
    %22 = vst.msk [vmem:[#allocation2] sm:$0xff] %vm21, 0.0
  $region17: #{topology_net_forward.7} parent=0 // pred_fallthru
    _
  %v23 = vld [vmem:[#allocation2] sm:$0xff]
  %v24 = vld [vmem:[%s0] sm:$0xff]
  %v25 = vld [vmem:[%s1] sm:$0xf]
  %v26 = vld [vmem:[%s1 + $0x4] sm:$0xf]
  %v27 = vld [vmem:[%s1 + $0x8] sm:$0xf]
  %v28 = vld [vmem:[%s1 + $0xc] sm:$0xf]
  %v29 = vld [vmem:[%s1 + $0x10] sm:$0xf]
  %v30 = vld [vmem:[%s1 + $0x14] sm:$0xf]
  %v31 = vld [vmem:[%s1 + $0x18] sm:$0xf]
  %v32 = vld [vmem:[%s1 + $0x1c] sm:$0xf]
  %v33 = vld [vmem:[%s1 + $0x20] sm:$0xf]
  %v34 = vld [vmem:[%s1 + $0x24] sm:$0xf]
  %v35 = vld [vmem:[%s1 + $0x28] sm:$0xf]
  %v36 = vld [vmem:[%s1 + $0x2c] sm:$0xf]
  %v37 = vld [vmem:[%s1 + $0x30] sm:$0xf]
  %v38 = vld [vmem:[%s1 + $0x34] sm:$0xf]
  %v39 = vld [vmem:[%s1 + $0x38] sm:$0xf]
  %v40 = vld [vmem:[%s1 + $0x3c] sm:$0xf]
  %v41 = vld [vmem:[%s1 + $0x40] sm:$0xf]
  %v42 = vld [vmem:[%s1 + $0x44] sm:$0xf]
  %v43 = vld [vmem:[%s1 + $0x48] sm:$0xf]
  %v44 = vld [vmem:[%s1 + $0x4c] sm:$0xf]
  %v45 = vld [vmem:[%s1 + $0x50] sm:$0xf]
  %v46 = vld [vmem:[%s1 + $0x54] sm:$0xf]
  %v47 = vld [vmem:[%s1 + $0x58] sm:$0xf]
  %v48 = vld [vmem:[%s1 + $0x5c] sm:$0xf]
  %v49 = vld [vmem:[%s1 + $0x60] sm:$0xf]
  %v50 = vld [vmem:[%s1 + $0x64] sm:$0xf]
  %v51 = vld [vmem:[%s1 + $0x68] sm:$0xf]
  %v52 = vld [vmem:[%s1 + $0x6c] sm:$0xf]
  %v53 = vld [vmem:[%s1 + $0x70] sm:$0xf]
  %v54 = vld [vmem:[%s1 + $0x74] sm:$0xf]
  %v55 = vld [vmem:[%s1 + $0x78] sm:$0xf]
  %v56 = vld [vmem:[%s1 + $0x7c] sm:$0xf]
  %v58 = vunpack.c.l.b16 %v24
  %v59 = vunpack.c.h.b16 %v24
  %v60 = vpack.c.b16 %v58, %v58
  %v61 = vpack.c.b16 %v59, %v59
  %v96 = vunpack.c.l.b16 %v25
  %v97 = vunpack.c.l.b16 %v26
  %v98 = vunpack.c.l.b16 %v27
  %v99 = vunpack.c.l.b16 %v28
  %v100 = vunpack.c.l.b16 %v29
  %v101 = vunpack.c.l.b16 %v30
  %v102 = vunpack.c.l.b16 %v31
  %v103 = vunpack.c.l.b16 %v32
  %v104 = vunpack.c.l.b16 %v33
  %v105 = vunpack.c.l.b16 %v34
  %v106 = vunpack.c.l.b16 %v35
  %v107 = vunpack.c.l.b16 %v36
  %v108 = vunpack.c.l.b16 %v37
  %v109 = vunpack.c.l.b16 %v38
  %v110 = vunpack.c.l.b16 %v39
  %v111 = vunpack.c.l.b16 %v40
  %v112 = vunpack.c.l.b16 %v41
  %v113 = vunpack.c.l.b16 %v42
  %v114 = vunpack.c.l.b16 %v43
  %v115 = vunpack.c.l.b16 %v44
  %v116 = vunpack.c.l.b16 %v45
  %v117 = vunpack.c.l.b16 %v46
  %v118 = vunpack.c.l.b16 %v47
  %v119 = vunpack.c.l.b16 %v48
  %v120 = vunpack.c.l.b16 %v49
  %v121 = vunpack.c.l.b16 %v50
  %v122 = vunpack.c.l.b16 %v51
  %v123 = vunpack.c.l.b16 %v52
  %v124 = vunpack.c.l.b16 %v53
  %v125 = vunpack.c.l.b16 %v54
  %v126 = vunpack.c.l.b16 %v55
  %v127 = vunpack.c.l.b16 %v56
  %v128 = vpack.c.b16 %v97, %v96
  %v129 = vpack.c.b16 %v99, %v98
  %v130 = vpack.c.b16 %v101, %v100
  %v131 = vpack.c.b16 %v103, %v102
  %v132 = vpack.c.b16 %v105, %v104
  %v133 = vpack.c.b16 %v107, %v106
  %v134 = vpack.c.b16 %v109, %v108
  %v135 = vpack.c.b16 %v111, %v110
  %v136 = vpack.c.b16 %v113, %v112
  %v137 = vpack.c.b16 %v115, %v114
  %v138 = vpack.c.b16 %v117, %v116
  %v139 = vpack.c.b16 %v119, %v118
  %v140 = vpack.c.b16 %v121, %v120
  %v141 = vpack.c.b16 %v123, %v122
  %v142 = vpack.c.b16 %v125, %v124
  %v143 = vpack.c.b16 %v127, %v126
  %160 = vmatprep.subr.bf16.mxu0 0
  %161 = vmatpush1.bf16.msra.mxu0 %v128
  %162 = vmatprep.subr.bf16.mxu0 0
  %163 = vmatpush1.bf16.msra.mxu0 %v129
  %164 = vmatprep.subr.bf16.mxu0 0
  %165 = vmatpush1.bf16.msra.mxu0 %v130
  %166 = vmatprep.subr.bf16.mxu0 0
  %167 = vmatpush1.bf16.msra.mxu0 %v131
  %168 = vmatprep.subr.bf16.mxu0 0
  %169 = vmatpush1.bf16.msra.mxu0 %v132
  %170 = vmatprep.subr.bf16.mxu0 0
  %171 = vmatpush1.bf16.msra.mxu0 %v133
  %172 = vmatprep.subr.bf16.mxu0 0
  %173 = vmatpush1.bf16.msra.mxu0 %v134
  %174 = vmatprep.subr.bf16.mxu0 0
  %175 = vmatpush1.bf16.msra.mxu0 %v135
  %176 = vmatprep.subr.bf16.mxu0 0
  %177 = vmatpush1.bf16.msra.mxu0 %v136
  %178 = vmatprep.subr.bf16.mxu0 0
  %179 = vmatpush1.bf16.msra.mxu0 %v137
  %180 = vmatprep.subr.bf16.mxu0 0
  %181 = vmatpush1.bf16.msra.mxu0 %v138
  %182 = vmatprep.subr.bf16.mxu0 0
  %183 = vmatpush1.bf16.msra.mxu0 %v139
  %184 = vmatprep.subr.bf16.mxu0 0
  %185 = vmatpush1.bf16.msra.mxu0 %v140
  %186 = vmatprep.subr.bf16.mxu0 0
  %187 = vmatpush1.bf16.msra.mxu0 %v141
  %188 = vmatprep.subr.bf16.mxu0 0
  %189 = vmatpush1.bf16.msra.mxu0 %v142
  %190 = vmatprep.subr.bf16.mxu0 0
  %191 = vmatpush1.bf16.msra.mxu0 %v143
  %192 = vmatprep.mubr.bf16.mxu0 %v61
  %193 = vmatmul.mubr.bf16.gmra.mrb[0].mxu0 %v60
  %v194 = vpop.f32.mrb[0].mxu0
  %v195 = vadd.f32 0.0, %v194
  %v196 = vpop.f32.mrb[0].mxu0
  %v197 = vpop.f32.mrb[0].mxu0
  %v198 = vpop.f32.mrb[0].mxu0
  %199 = vdwg.mxu0
  %v200 = vadd.f32 %v23, %v195
  %vm201 = vcmask 261120
  %202 = vst.msk [vmem:[#allocation2] sm:$0xff] %vm201, %v200
  // Predicated region
  $region18: #{topology_net_forward.7} parent=0 // pred_check
    %p203 = pneg %p17
  $region19: #{topology_net_forward.7} parent=0 // pred_check_branch
    %205 = sbr.rel (%p203) target = $region21
  $region20: #{topology_net_forward.7} parent=0 // pred_region
    %v206 = vld [vmem:[#allocation2] sm:$0xff]
    %v207 = vld [vmem:[%s2] sm:$0x1]
    %v209 = vlaneseq
    %v210 = vshrl.u32 %v209, 7
    %v211 = vsub.s32 0, %v210
    %v212 = vrot.slane %v207, %v211
    %v214 = vadd.f32 %v206, %v212
    %215 = vst.msk [vmem:[%s4] sm:$0xff] %vm201, %v214
    %vm216 = vcmp.gt.f32.partialorder %v214, 1.0
    %v217 = vsel %vm216, 1, 0
    %v218 = vcvt.s32.f32 %v217
    %219 = vst.msk [vmem:[%s3] sm:$0xff] %vm201, %v218
  $region21: #{topology_net_forward.7} parent=0 // pred_fallthru
    _
  // Predicated region
  $region22: #{topology_net_forward.7} parent=0 // pred_check
    _
  $region23: #{topology_net_forward.7} parent=0 // pred_check_branch
    %221 = sbr.rel (0) target = $region25
  $region24: #{topology_net_forward.7} parent=0 // pred_region
    _
  $region25: #{topology_net_forward.7} parent=0 // pred_fallthru
    _
  // Predicated region
  $region26: #{topology_net_forward.7} parent=0 // pred_check
    _
  $region27: #{topology_net_forward.7} parent=0 // pred_check_branch
    %223 = sbr.rel (0) target = $region29
  $region28: #{topology_net_forward.7} parent=0 // pred_region
    _
  $region29: #{topology_net_forward.7} parent=0 // pred_fallthru
    _
  // Predicated region
  $region30: #{topology_net_forward.7} parent=0 // pred_check
    _
  $region31: #{topology_net_forward.7} parent=0 // pred_check_branch
    %225 = sbr.rel (0) target = $region33
  $region32: #{topology_net_forward.7} parent=0 // pred_region
    _
  $region33: #{topology_net_forward.7} parent=0 // pred_fallthru
    _
  // Predicated region
  $region34: #{topology_net_forward.7} parent=0 // pred_check
    _
  $region35: #{topology_net_forward.7} parent=0 // pred_check_branch
    %227 = sbr.rel (0) target = $region37
  $region36: #{topology_net_forward.7} parent=0 // pred_region
    _
  $region37: #{topology_net_forward.7} parent=0 // pred_fallthru
    _

</llo_original>
